<compile_context>
chip_gen: v7x
topology: tpu7x:2x2x1
jax: 0.10.0
libtpu: 0.0.40
codegen_flags: <defaults>
</compile_context>

<pallas_src>
import functools

import jax
import jax.numpy as jnp
from jax.experimental import pallas as pl
from jax.experimental.pallas import tpu as pltpu


def _round_up(a: int, m: int) -> int:
    return ((a + m - 1) // m) * m


# Taylor coefficients of cos(2*pi*q) as a polynomial in u = q^2, valid for
# q in [0, 0.25] (angle in [0, pi/2]); coefficient k is (-1)^k (2*pi)^(2k)/(2k)!.
_COS_COEFFS = (
    1.0,
    -19.739208802178716,
    64.93939402266828,
    -85.45681720669373,
    60.24464137187667,
    -26.426256777968212,
    7.903536371318467,
)


def _cos_2pi(r):
    """cos(2*pi*r) for r in [-0.5, 0.5] via quarter-wave reduction + even poly."""
    a = jnp.abs(r)                      # [0, 0.5]
    q = jnp.minimum(a, 0.5 - a)         # [0, 0.25]  -> angle in [0, pi/2]
    u = q * q
    p = jnp.float32(_COS_COEFFS[-1])
    for c in _COS_COEFFS[-2::-1]:
        p = p * u + jnp.float32(c)
    # cos(2*pi*a) = -cos(2*pi*(0.5 - a)) for a > 0.25
    return jnp.where(a > 0.25, -p, p)


def fourier_emb_kernel(x_ref, p_ref, w2t_ref, o_ref, *, c_real: int, has_pad: bool):
    # x_ref:   (TN, 1)    per-token scalar (f32)
    # p_ref:   (8, Cp)    stacked params: [proj_w, proj_b, gamma, beta, mask, 0, 0, 0]
    # w2t_ref: (Cp, Cp)   noise_proj Linear weight, transposed (in, out)
    # o_ref:   (TN, Cp)   output tile (lane-dense: Cp multiple of 128)
    x = x_ref[...]                         # (TN, 1)
    pw = p_ref[0:1, :]                     # (1, Cp) proj.weight
    pb = p_ref[1:2, :]                     # (1, Cp) proj.bias
    g = p_ref[2:3, :]                      # (1, Cp) LayerNorm gamma (0 on padding)
    b = p_ref[3:4, :]                      # (1, Cp) LayerNorm beta  (0 on padding)

    # 1 -> C projection (pre-2*pi), then exploit cos periodicity: reduce to
    # r in [-0.5, 0.5) so f32 keeps its accuracy for large |x*w + b|.
    t = x * pw + pb                        # (TN, Cp)
    r = t - jnp.floor(t + 0.5)             # periodic range reduction
    emb = _cos_2pi(r)                      # cos(2*pi*r), VPU polynomial

    # LayerNorm over the real C channels, moments form (independent reductions).
    inv_c = jnp.float32(1.0 / c_real)
    if has_pad:
        m = emb * p_ref[4:5, :]            # channel mask: 1 real / 0 padded
    else:
        m = emb
    mean = jnp.sum(m, axis=-1, keepdims=True) * inv_c
    msq = jnp.sum(m * emb, axis=-1, keepdims=True) * inv_c
    var = msq - mean * mean
    normed = (emb - mean) * jax.lax.rsqrt(var + 1e-5)
    ln = normed * g + b                    # padded channels -> 0 (gamma/beta = 0)

    # Bias-free Linear(C, C) on the MXU: f32 operands (MXU is nowhere near the
    # bottleneck), f32 accumulation, store in the (optionally bf16) out dtype.
    # Padded ln columns are 0 and padded w2t rows/cols are 0, so padding is inert.
    acc = jnp.dot(ln, w2t_ref[...].astype(jnp.float32),
                  preferred_element_type=jnp.float32)
    o_ref[...] = acc.astype(o_ref.dtype)


def prepare_fourier_af3_params(proj_w, proj_b, ln_gamma, ln_beta, lin_w,
                               *, weight_dtype=jnp.float32):
    """Hoisted, call-once preprocessing of the module parameters.

    proj_w:   (C, 1)  torch nn.Linear(1, C).weight
    proj_b:   (C,)    torch nn.Linear(1, C).bias
    ln_gamma: (C,)    LayerNorm weight
    ln_beta:  (C,)    LayerNorm bias
    lin_w:    (C, C)  torch nn.Linear(C, C, bias=False).weight  (out, in)
    """
    proj_w = jnp.asarray(proj_w, jnp.float32).reshape(-1)
    C = proj_w.shape[0]
    Cp = max(128, _round_up(C, 128))       # lane-dense channel padding

    def _padc(v):
        v = jnp.asarray(v, jnp.float32).reshape(-1)
        return jnp.pad(v, (0, Cp - C))

    chan_mask = jnp.pad(jnp.ones((C,), jnp.float32), (0, Cp - C))
    zeros_row = jnp.zeros((Cp,), jnp.float32)
    # One (8, Cp) parameter tile instead of four (1, Cp) tiles: single DMA,
    # single padded VMEM tile, resident across all grid steps.
    params = jnp.stack(
        [proj_w if Cp == C else _padc(proj_w), _padc(proj_b),
         _padc(ln_gamma), _padc(ln_beta), chan_mask,
         zeros_row, zeros_row, zeros_row], axis=0)          # (8, Cp)

    # Transposed, zero-padded weight for x @ W.T on the MXU.
    w2t = jnp.asarray(lin_w, jnp.float32).T
    w2t = jnp.pad(w2t, ((0, Cp - C), (0, Cp - C))).astype(weight_dtype)
    return {"params": params, "w2t": w2t, "c": C, "cp": Cp}


def fourier_embedding_af3(x, prepared, *, tn=2048, out_dtype=jnp.float32,
                          min_grid_steps=2):
    """x: (B, T) float32 noise levels.  Returns (B, T, C) in out_dtype."""
    B, T = x.shape
    N = B * T
    C, Cp = prepared["c"], prepared["cp"]
    params, w2t = prepared["params"], prepared["w2t"]

    # Row tile: big by default to amortize the ~0.35 us per-grid-step overhead,
    # but capped so there are >= min_grid_steps steps for v7x's 2 TensorCores.
    TN = min(int(tn), _round_up(N, 8))
    if min_grid_steps > 1 and N > 8 * min_grid_steps:
        TN = min(TN, _round_up(pl.cdiv(N, min_grid_steps), 8))
    TN = max(8, _round_up(TN, 8))
    Np = _round_up(N, TN)

    x2 = x.reshape(N, 1).astype(jnp.float32)
    if Np != N:                            # ragged rows only
        x2 = jnp.pad(x2, ((0, Np - N), (0, 0)))

    kernel = functools.partial(fourier_emb_kernel, c_real=C, has_pad=(Cp != C))

    # VMEM budget for the double-buffered pipeline tiles; only raise the
    # scoped limit when the default would not fit (large TN and/or Cp).
    out_bytes = jnp.dtype(out_dtype).itemsize
    w_bytes = jnp.dtype(w2t.dtype).itemsize
    est = (2 * TN * 128 * 4                # x tile (1 lane padded to 128 in VMEM)
           + 2 * 8 * Cp * 4                # params tile
           + 2 * Cp * Cp * w_bytes         # resident weight tile
           + 2 * TN * Cp * out_bytes)      # output tile
    vmem_limit = None
    if est > (24 << 20):
        vmem_limit = min(_round_up(int(1.25 * est), 1 << 20), 64 << 20)
    # TODO(synk): once pipeline_mode=pl.Buffered(1) is stable for top-level
    # pallas_call inputs, single-buffer the constant params/w2t blocks to halve
    # their VMEM share for very wide embeddings (Cp >= 1024) on v7x.

    out = pl.pallas_call(
        kernel,
        out_shape=jax.ShapeDtypeStruct((Np, Cp), out_dtype),
        grid=(Np // TN,),
        in_specs=[
            pl.BlockSpec((TN, 1), lambda i: (i, 0)),      # row tile of x
            pl.BlockSpec((8, Cp), lambda i: (0, 0)),      # params, VMEM-resident
            pl.BlockSpec((Cp, Cp), lambda i: (0, 0)),     # weight, VMEM-resident
        ],
        out_specs=pl.BlockSpec((TN, Cp), lambda i: (i, 0)),
        compiler_params=pltpu.CompilerParams(
            dimension_semantics=("parallel",),            # megacore on v7x
            vmem_limit_bytes=vmem_limit),
    )(x2, params, w2t)

    if Np != N or Cp != C:                 # ragged case only; aligned path skips it
        out = out[:N, :C]
    return out.reshape(B, T, C)


def _reference(x, proj_w, proj_b, ln_gamma, ln_beta, lin_w):
    # Pure-JAX reference mirroring the PyTorch forward (in float32).
    h = x[..., None] * proj_w.reshape(-1) + proj_b          # (B, T, C)
    emb = jnp.cos(2.0 * jnp.pi * h)
    mean = jnp.mean(emb, axis=-1, keepdims=True)
    var = jnp.mean((emb - mean) ** 2, axis=-1, keepdims=True)
    normed = (emb - mean) / jnp.sqrt(var + 1e-5)
    ln = normed * ln_gamma + ln_beta
    return jnp.dot(ln, lin_w.T, precision=jax.lax.Precision.HIGHEST)


if __name__ == "__main__":
    key = jax.random.PRNGKey(0)
    k1, k2, k3, k4, k5, k6 = jax.random.split(key, 6)

    # ---- Case 1: ragged path (C = 64 < 128 -> channel padding, small N) ----
    B, T, C = 2, 8, 64
    proj_w = jax.random.normal(k1, (C, 1), dtype=jnp.float32)               # Linear(1, C).weight
    proj_b = jax.random.normal(k2, (C,), dtype=jnp.float32)                 # Linear(1, C).bias
    ln_gamma = jnp.ones((C,), dtype=jnp.float32)                            # LayerNorm default init
    ln_beta = jnp.zeros((C,), dtype=jnp.float32)
    lin_w = jax.random.normal(k3, (C, C), dtype=jnp.float32) / jnp.sqrt(C)  # Linear(C, C, bias=False)
    x = jax.random.uniform(k4, (B, T), dtype=jnp.float32)

    prepared = prepare_fourier_af3_params(proj_w, proj_b, ln_gamma, ln_beta, lin_w)
    ref = _reference(x, proj_w, proj_b, ln_gamma, ln_beta, lin_w)

    out = jax.block_until_ready(fourier_embedding_af3(x, prepared))
    assert out.shape == (B, T, C), out.shape
    assert jnp.allclose(out, ref, atol=5e-3, rtol=5e-3), \
        float(jnp.max(jnp.abs(out - ref)))

    # Tiny tile -> multi-step pipelined row grid on the ragged path.
    out2 = jax.block_until_ready(fourier_embedding_af3(x, prepared, tn=8))
    assert jnp.allclose(out2, ref, atol=5e-3, rtol=5e-3), \
        float(jnp.max(jnp.abs(out2 - ref)))

    # ---- Case 2: aligned fast path (C % 128 == 0, N % TN == 0, 2 grid steps) ----
    B2, T2, C2 = 2, 64, 128
    proj_w2 = jax.random.normal(k5, (C2, 1), dtype=jnp.float32)
    proj_b2 = jax.random.normal(k6, (C2,), dtype=jnp.float32)
    ln_gamma2 = jnp.ones((C2,), dtype=jnp.float32)
    ln_beta2 = jnp.zeros((C2,), dtype=jnp.float32)
    lin_w2 = jax.random.normal(k1, (C2, C2), dtype=jnp.float32) / jnp.sqrt(C2)
    x_big = jax.random.uniform(k2, (B2, T2), dtype=jnp.float32) * 10.0      # exercises range reduction

    prepared2 = prepare_fourier_af3_params(proj_w2, proj_b2, ln_gamma2, ln_beta2, lin_w2)
    ref2 = _reference(x_big, proj_w2, proj_b2, ln_gamma2, ln_beta2, lin_w2)

    out3 = jax.block_until_ready(fourier_embedding_af3(x_big, prepared2))
    assert out3.shape == (B2, T2, C2), out3.shape
    assert jnp.allclose(out3, ref2, atol=5e-3, rtol=5e-3), \
        float(jnp.max(jnp.abs(out3 - ref2)))

    # bf16 output (halves the dominant HBM writeback) with loosened tolerance.
    out4 = jax.block_until_ready(
        fourier_embedding_af3(x_big, prepared2, out_dtype=jnp.bfloat16))
    assert out4.dtype == jnp.bfloat16
    assert jnp.allclose(out4.astype(jnp.float32), ref2, atol=5e-2, rtol=5e-2), \
        float(jnp.max(jnp.abs(out4.astype(jnp.float32) - ref2)))

    print("KERNEL_OK")
</pallas_src>

<mosaic_0001>
module attributes {stable_mosaic.version = 11 : i64} {
  func.func @fourier_emb_kernel(%arg0: i32, %arg1: memref<16x1xf32, #tpu.memory_space<vmem>>, %arg2: memref<8x128xf32, #tpu.memory_space<vmem>>, %arg3: memref<128x128xf32, #tpu.memory_space<vmem>>, %arg4: memref<16x128xf32, #tpu.memory_space<vmem>>) attributes {dimension_semantics = [#tpu.dimension_semantics<parallel>], iteration_bounds = array<i64: 1>, scalar_prefetch = 0 : i64, scratch_operands = 0 : i64, tpu.core_type = #tpu.core_type<tc>, window_params = [{transform_indices = @transform_0, window_bounds = array<i64: 16, 1>}, {pipeline_mode = #tpu.pipeline_mode<synchronous>, transform_indices = @transform_1, window_bounds = array<i64: 8, 128>}, {pipeline_mode = #tpu.pipeline_mode<synchronous>, transform_indices = @transform_2, window_bounds = array<i64: 128, 128>}, {transform_indices = @transform_3, window_bounds = array<i64: 16, 128>}]} {
    %c0 = arith.constant 0 : index
    %c0_0 = arith.constant 0 : index
    %0 = vector.load %arg1[%c0, %c0_0] : memref<16x1xf32, #tpu.memory_space<vmem>>, vector<16x1xf32>
    %c0_1 = arith.constant 0 : index
    %c0_2 = arith.constant 0 : index
    %1 = vector.load %arg2[%c0_1, %c0_2] : memref<8x128xf32, #tpu.memory_space<vmem>>, vector<1x128xf32>
    %c1 = arith.constant 1 : index
    %c0_3 = arith.constant 0 : index
    %2 = vector.load %arg2[%c1, %c0_3] : memref<8x128xf32, #tpu.memory_space<vmem>>, vector<1x128xf32>
    %c2 = arith.constant 2 : index
    %c0_4 = arith.constant 0 : index
    %3 = vector.load %arg2[%c2, %c0_4] : memref<8x128xf32, #tpu.memory_space<vmem>>, vector<1x128xf32>
    %c3 = arith.constant 3 : index
    %c0_5 = arith.constant 0 : index
    %4 = vector.load %arg2[%c3, %c0_5] : memref<8x128xf32, #tpu.memory_space<vmem>>, vector<1x128xf32>
    %5 = vector.broadcast %0 : vector<16x1xf32> to vector<16x128xf32>
    %6 = vector.broadcast %1 : vector<1x128xf32> to vector<16x128xf32>
    %7 = arith.mulf %5, %6 : vector<16x128xf32>
    %8 = vector.broadcast %2 : vector<1x128xf32> to vector<16x128xf32>
    %9 = arith.addf %7, %8 : vector<16x128xf32>
    %cst = arith.constant 5.000000e-01 : f32
    %10 = vector.broadcast %cst : f32 to vector<16x128xf32>
    %11 = arith.addf %9, %10 : vector<16x128xf32>
    %12 = math.floor %11 : vector<16x128xf32>
    %13 = arith.subf %9, %12 : vector<16x128xf32>
    %14 = math.absf %13 : vector<16x128xf32>
    %cst_6 = arith.constant 5.000000e-01 : f32
    %15 = vector.broadcast %cst_6 : f32 to vector<16x128xf32>
    %16 = arith.subf %15, %14 : vector<16x128xf32>
    %17 = arith.minimumf %14, %16 : vector<16x128xf32>
    %18 = arith.mulf %17, %17 : vector<16x128xf32>
    %cst_7 = arith.constant 7.90353632 : f32
    %19 = vector.broadcast %cst_7 : f32 to vector<16x128xf32>
    %20 = arith.mulf %19, %18 : vector<16x128xf32>
    %cst_8 = arith.constant -26.4262562 : f32
    %21 = vector.broadcast %cst_8 : f32 to vector<16x128xf32>
    %22 = arith.addf %20, %21 : vector<16x128xf32>
    %23 = arith.mulf %22, %18 : vector<16x128xf32>
    %cst_9 = arith.constant 60.2446404 : f32
    %24 = vector.broadcast %cst_9 : f32 to vector<16x128xf32>
    %25 = arith.addf %23, %24 : vector<16x128xf32>
    %26 = arith.mulf %25, %18 : vector<16x128xf32>
    %cst_10 = arith.constant -85.4568176 : f32
    %27 = vector.broadcast %cst_10 : f32 to vector<16x128xf32>
    %28 = arith.addf %26, %27 : vector<16x128xf32>
    %29 = arith.mulf %28, %18 : vector<16x128xf32>
    %cst_11 = arith.constant 64.9393921 : f32
    %30 = vector.broadcast %cst_11 : f32 to vector<16x128xf32>
    %31 = arith.addf %29, %30 : vector<16x128xf32>
    %32 = arith.mulf %31, %18 : vector<16x128xf32>
    %cst_12 = arith.constant -19.7392082 : f32
    %33 = vector.broadcast %cst_12 : f32 to vector<16x128xf32>
    %34 = arith.addf %32, %33 : vector<16x128xf32>
    %35 = arith.mulf %34, %18 : vector<16x128xf32>
    %cst_13 = arith.constant 1.000000e+00 : f32
    %36 = vector.broadcast %cst_13 : f32 to vector<16x128xf32>
    %37 = arith.addf %35, %36 : vector<16x128xf32>
    %cst_14 = arith.constant 2.500000e-01 : f32
    %38 = vector.broadcast %cst_14 : f32 to vector<16x128xf32>
    %39 = arith.cmpf ogt, %14, %38 : vector<16x128xf32>
    %cst_15 = arith.constant 0.000000e+00 : f32
    %40 = vector.broadcast %cst_15 : f32 to vector<16x128xf32>
    %41 = arith.subf %40, %37 : vector<16x128xf32>
    %42 = arith.select %39, %41, %37 : vector<16x128xi1>, vector<16x128xf32>
    %c4 = arith.constant 4 : index
    %c0_16 = arith.constant 0 : index
    %43 = vector.load %arg2[%c4, %c0_16] : memref<8x128xf32, #tpu.memory_space<vmem>>, vector<1x128xf32>
    %44 = vector.broadcast %43 : vector<1x128xf32> to vector<16x128xf32>
    %45 = arith.mulf %42, %44 : vector<16x128xf32>
    %cst_17 = arith.constant dense<0.000000e+00> : vector<16xf32>
    %46 = vector.multi_reduction <add>, %45, %cst_17 [1] : vector<16x128xf32> to vector<16xf32>
    %47 = vector.shape_cast %46 : vector<16xf32> to vector<16x1xf32>
    %cst_18 = arith.constant 1.562500e-02 : f32
    %48 = vector.broadcast %cst_18 : f32 to vector<16x1xf32>
    %49 = arith.mulf %47, %48 : vector<16x1xf32>
    %50 = arith.mulf %45, %42 : vector<16x128xf32>
    %cst_19 = arith.constant dense<0.000000e+00> : vector<16xf32>
    %51 = vector.multi_reduction <add>, %50, %cst_19 [1] : vector<16x128xf32> to vector<16xf32>
    %52 = vector.shape_cast %51 : vector<16xf32> to vector<16x1xf32>
    %cst_20 = arith.constant 1.562500e-02 : f32
    %53 = vector.broadcast %cst_20 : f32 to vector<16x1xf32>
    %54 = arith.mulf %52, %53 : vector<16x1xf32>
    %55 = arith.mulf %49, %49 : vector<16x1xf32>
    %56 = arith.subf %54, %55 : vector<16x1xf32>
    %57 = vector.broadcast %49 : vector<16x1xf32> to vector<16x128xf32>
    %58 = arith.subf %42, %57 : vector<16x128xf32>
    %cst_21 = arith.constant 9.99999974E-6 : f32
    %59 = vector.broadcast %cst_21 : f32 to vector<16x1xf32>
    %60 = arith.addf %56, %59 : vector<16x1xf32>
    %61 = math.rsqrt %60 : vector<16x1xf32>
    %62 = vector.broadcast %61 : vector<16x1xf32> to vector<16x128xf32>
    %63 = arith.mulf %58, %62 : vector<16x128xf32>
    %64 = vector.broadcast %3 : vector<1x128xf32> to vector<16x128xf32>
    %65 = arith.mulf %63, %64 : vector<16x128xf32>
    %66 = vector.broadcast %4 : vector<1x128xf32> to vector<16x128xf32>
    %67 = arith.addf %65, %66 : vector<16x128xf32>
    %c0_22 = arith.constant 0 : index
    %c0_23 = arith.constant 0 : index
    %68 = vector.load %arg3[%c0_22, %c0_23] : memref<128x128xf32, #tpu.memory_space<vmem>>, vector<128x128xf32>
    %cst_24 = arith.constant dense<0.000000e+00> : vector<16x128xf32>
    %69 = tpu.matmul %67, %68, %cst_24 {dimension_numbers = #tpu.dot_dimension_numbers<[1], [0], [0], [1], [0, 0, 1, 1], [], []>} : vector<16x128xf32>, vector<128x128xf32>, vector<16x128xf32> -> vector<16x128xf32>
    %c0_25 = arith.constant 0 : index
    %c0_26 = arith.constant 0 : index
    %70 = vector.load %arg4[%c0_25, %c0_26] : memref<16x128xf32, #tpu.memory_space<vmem>>, vector<16x128xf32>
    tpu.vector_store %arg4[%c0_25, %c0_26], %69 {strides = array<i32>} : memref<16x128xf32, #tpu.memory_space<vmem>>, vector<16x128xf32>,
    return
  }
  func.func @transform_0(%arg0: i32) -> (i32, i32) {
    %c0_i32 = arith.constant 0 : i32
    %c0_i32_0 = arith.constant 0 : i32
    return %arg0, %c0_i32 : i32, i32
  }
  func.func @transform_1(%arg0: i32) -> (i32, i32) {
    %c0_i32 = arith.constant 0 : i32
    %c0_i32_0 = arith.constant 0 : i32
    %c0_i32_1 = arith.constant 0 : i32
    return %c0_i32, %c0_i32_0 : i32, i32
  }
  func.func @transform_2(%arg0: i32) -> (i32, i32) {
    %c0_i32 = arith.constant 0 : i32
    %c0_i32_0 = arith.constant 0 : i32
    %c0_i32_1 = arith.constant 0 : i32
    return %c0_i32, %c0_i32_0 : i32, i32
  }
  func.func @transform_3(%arg0: i32) -> (i32, i32) {
    %c0_i32 = arith.constant 0 : i32
    %c0_i32_0 = arith.constant 0 : i32
    return %arg0, %c0_i32 : i32, i32
  }
}

</mosaic_0001>

<llo_original>
// kernel: tpu_custom_call.1
$region0: #{tpu_custom_call.1}
  #allocation0 [shape = 'u32[]', space=smem, size = 0x4, offset = 0x4, fixed_abs, tag = 'smem constant byte address 0x4 - core index']
  #allocation1 [shape = 'u32[144,128]{1,0:T(1,128)}', space=vmem, size = 0x12000, scoped, tag = 'internal scratch']
  %s0 = inlined_call_operand.vmem [shape: f32[16,1], index: 0, kind: input, shape index: {}]
  %s1 = inlined_call_operand.vmem [shape: f32[8,128], index: 1, kind: input, shape index: {}]
  %s2 = inlined_call_operand.hbm [shape: f32[128,128], index: 2, kind: input, shape index: {}]
  %s3 = inlined_call_operand.hbm [shape: f32[16,128], index: 3, kind: output, shape index: {}]
  %s4 = sld [smem:[#allocation0]]
  $region26: #{tpu_custom_call.1} parent=0
    _
  %s6 = ssub.s32 1, %s4
  %s7 = scalar_select 0, %s6, %s4
  $region1: #{tpu_custom_call.1} parent=0
    #allocation2 [shape = 'u8[65536]{0}', space=vmem, size = 0x10000, scoped, tag = 'input window, operand 2, single buffered']
    #allocation3 [shape = 's32[1]{0}', space=sflag, size = 0x4, scoped, tag = 'scoped memory for tpu_custom_call.1']
    #allocation4 [shape = 's32[1]{0}', space=sflag, size = 0x4, scoped, tag = 'scoped memory for tpu_custom_call.1']
    #allocation5 [shape = 'u8[8192]{0}', space=vmem, size = 0x2000, scoped, tag = 'output window, operand 0, single buffered']
    %8 = vsyncpa [#allocation3], 0
    %9 = vsyncpa [#allocation4], 0
    // Predicated region
    $region2: #{tpu_custom_call.1} parent=1 // pred_check
      _
    $region3: #{tpu_custom_call.1} parent=1 // pred_check_branch
      %11 = sbr.rel (0) target = $region5
    $region4: #{tpu_custom_call.1} parent=1 // pred_region
      _
    $region5: #{tpu_custom_call.1} parent=1 // pred_fallthru
      _
    // Predicated region
    $region6: #{tpu_custom_call.1} parent=1 // pred_check
      _
    $region7: #{tpu_custom_call.1} parent=1 // pred_check_branch
      %13 = sbr.rel (0) target = $region9
    $region8: #{tpu_custom_call.1} parent=1 // pred_region
      _
    $region9: #{tpu_custom_call.1} parent=1 // pred_fallthru
      _
    // Predicated region
    $region10: #{tpu_custom_call.1} parent=1 // pred_check
      _
    $region11: #{tpu_custom_call.1} parent=1 // pred_check_branch
      %15 = sbr.rel (0) target = $region13
    $region12: #{tpu_custom_call.1} parent=1 // pred_region
      %s17 = ssub.s32 2048, 2048
      %18 = vsyncadd [#allocation3], %s17
      %s19 = sshll.u32 [#allocation2], 4
      %s20 = int_to_ptr.vmem [resolvable:$true] %s19
      %25 = dma.hbm_to_vmem [thread:$0]  %s2, 2048, %s20, [#allocation3], 128, 128, 8
    $region13: #{tpu_custom_call.1} parent=1 // pred_fallthru
      _
    // Predicated region
    $region14: #{tpu_custom_call.1} parent=1 // pred_check
      _
    $region15: #{tpu_custom_call.1} parent=1 // pred_check_branch
      %27 = sbr.rel (0) target = $region17
    $region16: #{tpu_custom_call.1} parent=1 // pred_region
      %28 = dma.done [#allocation3], 2048
    $region17: #{tpu_custom_call.1} parent=1 // pred_fallthru
      _
    %v29 = vld [vmem:[%s0] sm:$0xff]
    %v30 = vld [vmem:[%s0 + $0x8] sm:$0xff]
    %v31 = vld [vmem:[%s1] sm:$0x1]
    %v32 = vld [vmem:[%s1 + $0x1] sm:$0x1]
    %v33 = vld [vmem:[%s1 + $0x2] sm:$0x1]
    %v34 = vld [vmem:[%s1 + $0x3] sm:$0x1]
    %36 = vset.pattern.permute.xlu0 0
    %37 = vperm.xlu0 %36, %v29
    %v38 = vpop.permute.xlu0 %37
    %41 = vset.pattern.permute.xlu0 0
    %42 = vperm.xlu0 %41, %v30
    %v43 = vpop.permute.xlu0 %42
    %v45 = vlaneseq
    %v46 = vshrl.u32 %v45, 7
    %v47 = vsub.s32 0, %v46
    %v48 = vrot.slane %v31, %v47
    %v49 = vmul.f32 %v38, %v48
    %v50 = vmul.f32 %v43, %v48
    %v51 = vlaneseq
    %v52 = vshrl.u32 %v51, 7
    %v53 = vsub.s32 0, %v52
    %v54 = vrot.slane %v32, %v53
    %v55 = vadd.f32 %v49, %v54
    %v56 = vadd.f32 %v50, %v54
    %v57 = vadd.f32 %v55, 0.5
    %v58 = vadd.f32 %v56, 0.5
    %v59 = vfloor.f32 %v57
    %v60 = vfloor.f32 %v58
    %v61 = vsub.f32 %v55, %v59
    %v62 = vsub.f32 %v56, %v60
    %v63 = vand.u32 2147483647, %v61
    %v64 = vand.u32 2147483647, %v62
    %v65 = vsub.f32 0.5, %v63
    %v66 = vsub.f32 0.5, %v64
    %v67 = vmin.f32 %v63, %v65
    %v68 = vmin.f32 %v64, %v66
    %v69 = vmul.f32 %v67, %v67
    %v70 = vmul.f32 %v68, %v68
    %v71 = vmul.f32 %v69, 7.9035363
    %v72 = vmul.f32 %v70, 7.9035363
    %v73 = vadd.f32 %v71, -26.426256
    %v74 = vadd.f32 %v72, -26.426256
    %v75 = vmul.f32 %v73, %v69
    %v76 = vmul.f32 %v74, %v70
    %v77 = vadd.f32 %v75, 60.24464
    %v78 = vadd.f32 %v76, 60.24464
    %v79 = vmul.f32 %v77, %v69
    %v80 = vmul.f32 %v78, %v70
    %v81 = vadd.f32 %v79, -85.45682
    %v82 = vadd.f32 %v80, -85.45682
    %v83 = vmul.f32 %v81, %v69
    %v84 = vmul.f32 %v82, %v70
    %v85 = vadd.f32 %v83, 64.93939
    %v86 = vadd.f32 %v84, 64.93939
    %v87 = vmul.f32 %v85, %v69
    %v88 = vmul.f32 %v86, %v70
    %v89 = vadd.f32 %v87, -19.739208
    %v90 = vadd.f32 %v88, -19.739208
    %v91 = vmul.f32 %v89, %v69
    %v92 = vmul.f32 %v90, %v70
    %v93 = vadd.f32 %v91, 1.0
    %v94 = vadd.f32 %v92, 1.0
    %vm95 = vcmp.gt.f32.partialorder %v63, 0.25
    %vm96 = vcmp.gt.f32.partialorder %v64, 0.25
    %v97 = vsub.f32 0.0, %v93
    %v98 = vsub.f32 0.0, %v94
    %v99 = vsel %vm95, %v97, %v93
    %v100 = vsel %vm96, %v98, %v94
    %v101 = vld [vmem:[%s1 + $0x4] sm:$0x1]
    %v102 = vlaneseq
    %v103 = vshrl.u32 %v102, 7
    %v104 = vsub.s32 0, %v103
    %v105 = vrot.slane %v101, %v104
    %v106 = vmul.f32 %v99, %v105
    %v107 = vmul.f32 %v100, %v105
    %108 = vadd.xlane.f32.xlu0 %v106
    %v109 = vpop.xlane.xlu0 %108
    %110 = vadd.xlane.f32.xlu0 %v107
    %v111 = vpop.xlane.xlu0 %110
    %v112 = vmul.f32 %v109, 0.015625
    %v113 = vmul.f32 %v111, 0.015625
    %v114 = vmul.f32 %v106, %v99
    %v115 = vmul.f32 %v107, %v100
    %116 = vadd.xlane.f32.xlu0 %v114
    %v117 = vpop.xlane.xlu0 %116
    %118 = vadd.xlane.f32.xlu0 %v115
    %v119 = vpop.xlane.xlu0 %118
    %v120 = vmul.f32 %v117, 0.015625
    %v121 = vmul.f32 %v119, 0.015625
    %v122 = vmul.f32 %v112, %v112
    %v123 = vmul.f32 %v113, %v113
    %v124 = vsub.f32 %v120, %v122
    %v125 = vsub.f32 %v121, %v123
    %v126 = vsub.f32 %v99, %v112
    %v127 = vsub.f32 %v100, %v113
    %v128 = vadd.f32 %v124, 1e-05
    %v129 = vadd.f32 %v125, 1e-05
    %v130 = vrsqrt.pop %v128
    %v131 = vrsqrt.pop %v129
    %v132 = vmul.f32 %v126, %v130
    %v133 = vmul.f32 %v127, %v131
    %v134 = vlaneseq
    %v135 = vshrl.u32 %v134, 7
    %v136 = vsub.s32 0, %v135
    %v137 = vrot.slane %v33, %v136
    %v138 = vmul.f32 %v132, %v137
    %v139 = vmul.f32 %v133, %v137
    %v140 = vlaneseq
    %v141 = vshrl.u32 %v140, 7
    %v142 = vsub.s32 0, %v141
    %v143 = vrot.slane %v34, %v142
    %v144 = vadd.f32 %v138, %v143
    %v145 = vadd.f32 %v139, %v143
    %v146 = vld [vmem:[#allocation2] sm:$0xff]
    %v147 = vld [vmem:[#allocation2 + $0x8] sm:$0xff]
    %v148 = vld [vmem:[#allocation2 + $0x10] sm:$0xff]
    %v149 = vld [vmem:[#allocation2 + $0x18] sm:$0xff]
    %v150 = vld [vmem:[#allocation2 + $0x20] sm:$0xff]
    %v151 = vld [vmem:[#allocation2 + $0x28] sm:$0xff]
    %v152 = vld [vmem:[#allocation2 + $0x30] sm:$0xff]
    %v153 = vld [vmem:[#allocation2 + $0x38] sm:$0xff]
    %v154 = vld [vmem:[#allocation2 + $0x40] sm:$0xff]
    %v155 = vld [vmem:[#allocation2 + $0x48] sm:$0xff]
    %v156 = vld [vmem:[#allocation2 + $0x50] sm:$0xff]
    %v157 = vld [vmem:[#allocation2 + $0x58] sm:$0xff]
    %v158 = vld [vmem:[#allocation2 + $0x60] sm:$0xff]
    %v159 = vld [vmem:[#allocation2 + $0x68] sm:$0xff]
    %v160 = vld [vmem:[#allocation2 + $0x70] sm:$0xff]
    %v161 = vld [vmem:[#allocation2 + $0x78] sm:$0xff]
    %162 = vmatprep.subr.mxu0 0.0
    %163 = vmatpush1.msra.mxu0 %v146
    %164 = vmatprep.subr.mxu0 0.0
    %165 = vmatpush1.msra.mxu0 %v147
    %166 = vmatprep.subr.mxu0 0.0
    %167 = vmatpush1.msra.mxu0 %v148
    %168 = vmatprep.subr.mxu0 0.0
    %169 = vmatpush1.msra.mxu0 %v149
    %170 = vmatprep.subr.mxu0 0.0
    %171 = vmatpush1.msra.mxu0 %v150
    %172 = vmatprep.subr.mxu0 0.0
    %173 = vmatpush1.msra.mxu0 %v151
    %174 = vmatprep.subr.mxu0 0.0
    %175 = vmatpush1.msra.mxu0 %v152
    %176 = vmatprep.subr.mxu0 0.0
    %177 = vmatpush1.msra.mxu0 %v153
    %178 = vmatprep.subr.mxu0 0.0
    %179 = vmatpush1.msra.mxu0 %v154
    %180 = vmatprep.subr.mxu0 0.0
    %181 = vmatpush1.msra.mxu0 %v155
    %182 = vmatprep.subr.mxu0 0.0
    %183 = vmatpush1.msra.mxu0 %v156
    %184 = vmatprep.subr.mxu0 0.0
    %185 = vmatpush1.msra.mxu0 %v157
    %186 = vmatprep.subr.mxu0 0.0
    %187 = vmatpush1.msra.mxu0 %v158
    %188 = vmatprep.subr.mxu0 0.0
    %189 = vmatpush1.msra.mxu0 %v159
    %190 = vmatprep.subr.mxu0 0.0
    %191 = vmatpush1.msra.mxu0 %v160
    %192 = vmatprep.subr.mxu0 0.0
    %193 = vmatpush1.msra.mxu0 %v161
    %194 = vmatprep.subr.mxu0 0.0
    %195 = vmatpush1.msra.mxu0 0.0
    %196 = vmatprep.subr.mxu0 0.0
    %197 = vmatpush1.msra.mxu0 0.0
    %198 = vmatprep.subr.mxu0 0.0
    %199 = vmatpush1.msra.mxu0 0.0
    %200 = vmatprep.subr.mxu0 0.0
    %201 = vmatpush1.msra.mxu0 0.0
    %202 = vmatprep.subr.mxu0 0.0
    %203 = vmatpush1.msra.mxu0 0.0
    %204 = vmatprep.subr.mxu0 0.0
    %205 = vmatpush1.msra.mxu0 0.0
    %206 = vmatprep.subr.mxu0 0.0
    %207 = vmatpush1.msra.mxu0 0.0
    %208 = vmatprep.subr.mxu0 0.0
    %209 = vmatpush1.msra.mxu0 0.0
    %210 = vmatprep.subr.mxu0 0.0
    %211 = vmatpush1.msra.mxu0 0.0
    %212 = vmatprep.subr.mxu0 0.0
    %213 = vmatpush1.msra.mxu0 0.0
    %214 = vmatprep.subr.mxu0 0.0
    %215 = vmatpush1.msra.mxu0 0.0
    %216 = vmatprep.subr.mxu0 0.0
    %217 = vmatpush1.msra.mxu0 0.0
    %218 = vmatprep.subr.mxu0 0.0
    %219 = vmatpush1.msra.mxu0 0.0
    %220 = vmatprep.subr.mxu0 0.0
    %221 = vmatpush1.msra.mxu0 0.0
    %222 = vmatprep.subr.mxu0 0.0
    %223 = vmatpush1.msra.mxu0 0.0
    %224 = vmatprep.subr.mxu0 0.0
    %225 = vmatpush1.msra.mxu0 0.0
    %226 = vmatprep.mubr.f32.mxu0 0.0
    %227 = vmatmul.mubr.f32.gmra.mrb[0].mxu0 %v144
    %v228 = vpop.f32.mrb[0].mxu0
    %v229 = vadd.f32 0.0, %v228
    %v230 = vpop.f32.mrb[0].mxu0
    %231 = vmatprep.mubr.f32.mxu0 0.0
    %232 = vmatmul.mubr.f32.gmra.mrb[0].mxu0 %v145
    %v233 = vpop.f32.mrb[0].mxu0
    %v234 = vadd.f32 0.0, %v233
    %v235 = vpop.f32.mrb[0].mxu0
    %236 = vdwg.mxu0
    %237 = vst [vmem:[#allocation5] sm:$0xff] %v229
    %238 = vst [vmem:[#allocation5 + $0x8] sm:$0xff] %v234
    // Predicated region
    $region18: #{tpu_custom_call.1} parent=1 // pred_check
      _
    $region19: #{tpu_custom_call.1} parent=1 // pred_check_branch
      %240 = sbr.rel (0) target = $region21
    $region20: #{tpu_custom_call.1} parent=1 // pred_region
      %s242 = ssub.s32 256, 256
      %243 = vsyncadd [#allocation4], %s242
      %s244 = sshll.u32 [#allocation5], 4
      %s245 = int_to_ptr.vmem [resolvable:$true] %s244
      %250 = dma.vmem_to_hbm [thread:$0]  %s245, 256, %s3, [#allocation4], 128, 128, 8
    $region21: #{tpu_custom_call.1} parent=1 // pred_fallthru
      _
    // Predicated region
    $region22: #{tpu_custom_call.1} parent=1 // pred_check
      _
    $region23: #{tpu_custom_call.1} parent=1 // pred_check_branch
      %252 = sbr.rel (0) target = $region25
    $region24: #{tpu_custom_call.1} parent=1 // pred_region
      %253 = dma.done [#allocation4], 256
    $region25: #{tpu_custom_call.1} parent=1 // pred_fallthru
      _
    %254 = vsyncpa [#allocation3], 1
    %255 = vsyncpa [#allocation4], 1

</llo_original>
